<compile_context>
chip_gen: v7x
topology: tpu7x:2x2x1
jax: 0.10.0
libtpu: 0.0.40
codegen_flags: <defaults>
</compile_context>

<pallas_src>
import jax
import jax.numpy as jnp
from jax.experimental import pallas as pl
from jax.experimental.pallas import tpu as pltpu

LANE = 128      # pad every parameter's last dim to the 128-lane width
SUBLANE = 8     # f32 sublane: every packed block starts on an 8-row boundary


# --------------------------- parameter packing ----------------------------- #
PARAM_ORDER = [
    "w1", "b1", "w2", "b2", "w3", "b3",
    "w4", "b4", "w5", "b5", "w6", "b6",
    "n1a_w", "n1a_b", "n1g_w", "n1g_b", "n1be_w", "n1be_b",
    "n2a_w", "n2a_b", "n2g_w", "n2g_b", "n2be_w", "n2be_b",
]


def pack_params(params):
    """Concatenate all params into one (rows, 128) f32 slab.

    Each block is zero-padded to LANE columns and to a multiple of SUBLANE
    rows so every block starts at an (8,128)-tile-aligned offset.  Returns the
    slab and a dict name -> (row_offset, rows, cols) of static offsets.
    """
    blocks, offsets, row = [], {}, 0
    for name in PARAM_ORDER:
        a = jnp.asarray(params[name], jnp.float32)
        r, c = a.shape
        rp = ((r + SUBLANE - 1) // SUBLANE) * SUBLANE
        blk = jnp.zeros((rp, LANE), jnp.float32).at[:r, :c].set(a)
        blocks.append(blk)
        offsets[name] = (row, r, c)
        row += rp
    return jnp.concatenate(blocks, axis=0), offsets


# ----------------------------- Pallas kernel ------------------------------ #
def make_kernel(offsets):
    """Build the kernel with the slab layout baked in as static slices."""

    def kernel(x_ref, z_ref, p_ref, out_ref):
        def weight(name):
            r, nr, nc = offsets[name]
            return p_ref[r:r + nr, :nc]                 # static slice, (in, out)

        def bias(name):
            r, _, nc = offsets[name]
            return p_ref[r:r + 1, :nc]                  # (1, out), broadcasts

        def linear(v, wname, bname):
            return (
                jnp.dot(v, weight(wname), preferred_element_type=jnp.float32)
                + bias(bname)
            )

        leaky = lambda v: jnp.where(v >= 0, v, 0.2 * v)  # LeakyReLU(0.2)

        def layernorm(v):  # LayerNorm over last dim, elementwise_affine=False
            mu = jnp.mean(v, axis=-1, keepdims=True)
            var = jnp.mean((v - mu) * (v - mu), axis=-1, keepdims=True)
            return (v - mu) * jax.lax.rsqrt(var + 1e-5)

        x = x_ref[...]
        z = z_ref[...]

        # ---- ConditionInjection #1 projection (gamma/beta over num_features)
        h1 = leaky(linear(z, "n1a_w", "n1a_b"))
        gamma1 = linear(h1, "n1g_w", "n1g_b")
        beta1 = linear(h1, "n1be_w", "n1be_b")

        # ---- ConditionInjection #2 projection (gamma/beta over hidden)
        h2 = leaky(linear(z, "n2a_w", "n2a_b"))
        gamma2 = linear(h2, "n2g_w", "n2g_b")
        beta2 = linear(h2, "n2be_w", "n2be_b")

        # ---- main trunk
        out = linear(x, "w1", "b1")                          # fc1
        out = leaky(layernorm(out) * (1.0 + gamma1) + beta1)  # norm1 + act
        out = leaky(linear(out, "w2", "b2"))                 # fc2 + act
        out = linear(out, "w3", "b3")                        # fc3
        out = leaky(layernorm(out) * (1.0 + gamma2) + beta2)  # norm2 + act
        out = leaky(linear(out, "w4", "b4"))                 # fc4 + act
        out = leaky(linear(out, "w5", "b5"))                 # fc5 + act
        out = jax.nn.sigmoid(linear(out, "w6", "b6"))        # fc6 + sigmoid

        out_ref[...] = out.astype(out_ref.dtype)

    return kernel


# ------------------------------- wrapper ----------------------------------- #
def latent_generator_forward(x, z, slab, offsets):
    B, NF = x.shape
    vmem = pl.BlockSpec(memory_space=pltpu.MemorySpace.VMEM)
    return pl.pallas_call(
        make_kernel(offsets),
        out_shape=jax.ShapeDtypeStruct((B, NF), jnp.float32),
        in_specs=[vmem, vmem, vmem],      # x, z, param slab — 3 DMAs total
        out_specs=vmem,
    )(x, z, slab)


# ------------------------- parameter initialization ------------------------ #
def _xavier_uniform(key, fan_in, fan_out, gain=0.02):
    bound = gain * jnp.sqrt(6.0 / (fan_in + fan_out))
    return jax.random.uniform(
        key, (fan_in, fan_out), jnp.float32, minval=-bound, maxval=bound
    )


def _spectral_normalize(w, n_iter=30):
    # Deterministic power iteration approximating PyTorch spectral_norm.
    v = jnp.ones((w.shape[1],), jnp.float32) / jnp.sqrt(w.shape[1])
    for _ in range(n_iter):
        u = w @ v
        u = u / (jnp.linalg.norm(u) + 1e-12)
        v = w.T @ u
        v = v / (jnp.linalg.norm(v) + 1e-12)
    sigma = u @ (w @ v)
    return w / (sigma + 1e-12)


def init_params(key, num_features, hidden, z_dim):
    keys = jax.random.split(key, 10)
    dims = [
        ("w1", num_features, num_features),
        ("w2", num_features, num_features),
        ("w3", num_features, hidden),
        ("w4", hidden, hidden * 2),
        ("w5", hidden * 2, num_features),
        ("w6", num_features, num_features),
        ("n1a_w", z_dim, z_dim),
        ("n1b_w", z_dim, num_features * 2),   # split into gamma/beta below
        ("n2a_w", z_dim, z_dim),
        ("n2b_w", z_dim, hidden * 2),         # split into gamma/beta below
    ]
    params = {}
    for (name, fin, fout), k in zip(dims, keys):
        w = _spectral_normalize(_xavier_uniform(k, fin, fout))
        params[name] = w
        bname = name.replace("_w", "_b") if "_w" in name else "b" + name[1:]
        params[bname] = jnp.zeros((1, fout), jnp.float32)

    # Exact column split of the ConditionInjection fc2 (== torch chunk(2, 1)):
    # spectral norm is applied to the full matrix first, so semantics match.
    nf, h = num_features, hidden
    params["n1g_w"], params["n1be_w"] = params["n1b_w"][:, :nf], params["n1b_w"][:, nf:]
    params["n1g_b"], params["n1be_b"] = params["n1b_b"][:, :nf], params["n1b_b"][:, nf:]
    params["n2g_w"], params["n2be_w"] = params["n2b_w"][:, :h], params["n2b_w"][:, h:]
    params["n2g_b"], params["n2be_b"] = params["n2b_b"][:, :h], params["n2b_b"][:, h:]
    for k in ("n1b_w", "n1b_b", "n2b_w", "n2b_b"):
        del params[k]
    return params


# ----------------------------- pure-JAX reference --------------------------- #
def reference_forward(x, z, p):
    leaky = lambda v: jnp.where(v >= 0, v, 0.2 * v)
    ln = lambda v: (v - v.mean(-1, keepdims=True)) * jax.lax.rsqrt(
        v.var(-1, keepdims=True) + 1e-5
    )
    lin = lambda v, w, b: v @ p[w] + p[b]
    h1 = leaky(lin(z, "n1a_w", "n1a_b"))
    gamma1, beta1 = lin(h1, "n1g_w", "n1g_b"), lin(h1, "n1be_w", "n1be_b")
    h2 = leaky(lin(z, "n2a_w", "n2a_b"))
    gamma2, beta2 = lin(h2, "n2g_w", "n2g_b"), lin(h2, "n2be_w", "n2be_b")
    out = lin(x, "w1", "b1")
    out = leaky(ln(out) * (1 + gamma1) + beta1)
    out = leaky(lin(out, "w2", "b2"))
    out = lin(out, "w3", "b3")
    out = leaky(ln(out) * (1 + gamma2) + beta2)
    out = leaky(lin(out, "w4", "b4"))
    out = leaky(lin(out, "w5", "b5"))
    return jax.nn.sigmoid(lin(out, "w6", "b6"))


# --------------------------------- main ------------------------------------ #
if __name__ == "__main__":
    B, NUM_FEATURES, HIDDEN, Z_DIM = 8, 32, 32, 16

    root = jax.random.PRNGKey(0)
    k_param, k_x, k_z = jax.random.split(root, 3)

    params = init_params(k_param, NUM_FEATURES, HIDDEN, Z_DIM)
    slab, offsets = pack_params(params)          # one lane-padded param slab

    x = jax.random.normal(k_x, (B, NUM_FEATURES), jnp.float32)
    z = jax.random.normal(k_z, (B, Z_DIM), jnp.float32)

    out = latent_generator_forward(x, z, slab, offsets)
    out = jax.block_until_ready(out)

    ref = reference_forward(x, z, params)
    assert out.shape == (B, NUM_FEATURES)
    assert bool(jnp.all(jnp.isfinite(out)))
    assert bool(jnp.allclose(out, ref, atol=1e-5, rtol=1e-5))

    print("KERNEL_OK")
</pallas_src>

<mosaic_0001>
module attributes {stable_mosaic.version = 11 : i64} {
  func.func @kernel(%arg0: memref<8x32xf32, #tpu.memory_space<vmem>>, %arg1: memref<8x16xf32, #tpu.memory_space<vmem>>, %arg2: memref<416x128xf32, #tpu.memory_space<vmem>>, %arg3: memref<8x32xf32, #tpu.memory_space<vmem>>) attributes {dimension_semantics = [], scalar_prefetch = 0 : i64, scratch_operands = 0 : i64, tpu.core_type = #tpu.core_type<tc>} {
    %c0 = arith.constant 0 : index
    %c0_0 = arith.constant 0 : index
    %0 = vector.load %arg0[%c0, %c0_0] : memref<8x32xf32, #tpu.memory_space<vmem>>, vector<8x32xf32>
    %c0_1 = arith.constant 0 : index
    %c0_2 = arith.constant 0 : index
    %1 = vector.load %arg1[%c0_1, %c0_2] : memref<8x16xf32, #tpu.memory_space<vmem>>, vector<8x16xf32>
    %c272 = arith.constant 272 : index
    %c0_3 = arith.constant 0 : index
    %2 = vector.load %arg2[%c272, %c0_3] : memref<416x128xf32, #tpu.memory_space<vmem>>, vector<16x16xf32>
    %cst = arith.constant dense<0.000000e+00> : vector<8x16xf32>
    %3 = tpu.matmul %1, %2, %cst {dimension_numbers = #tpu.dot_dimension_numbers<[1], [0], [0], [1], [0, 0, 1, 1], [], []>} : vector<8x16xf32>, vector<16x16xf32>, vector<8x16xf32> -> vector<8x16xf32>
    %c288 = arith.constant 288 : index
    %c0_4 = arith.constant 0 : index
    %4 = vector.load %arg2[%c288, %c0_4] : memref<416x128xf32, #tpu.memory_space<vmem>>, vector<1x16xf32>
    %5 = vector.broadcast %4 : vector<1x16xf32> to vector<8x16xf32>
    %6 = arith.addf %3, %5 : vector<8x16xf32>
    %cst_5 = arith.constant 0.000000e+00 : f32
    %7 = vector.broadcast %cst_5 : f32 to vector<8x16xf32>
    %8 = arith.cmpf oge, %6, %7 : vector<8x16xf32>
    %cst_6 = arith.constant 2.000000e-01 : f32
    %9 = vector.broadcast %cst_6 : f32 to vector<8x16xf32>
    %10 = arith.mulf %9, %6 : vector<8x16xf32>
    %11 = arith.select %8, %6, %10 : vector<8x16xi1>, vector<8x16xf32>
    %c296 = arith.constant 296 : index
    %c0_7 = arith.constant 0 : index
    %12 = vector.load %arg2[%c296, %c0_7] : memref<416x128xf32, #tpu.memory_space<vmem>>, vector<16x32xf32>
    %cst_8 = arith.constant dense<0.000000e+00> : vector<8x32xf32>
    %13 = tpu.matmul %11, %12, %cst_8 {dimension_numbers = #tpu.dot_dimension_numbers<[1], [0], [0], [1], [0, 0, 1, 1], [], []>} : vector<8x16xf32>, vector<16x32xf32>, vector<8x32xf32> -> vector<8x32xf32>
    %c312 = arith.constant 312 : index
    %c0_9 = arith.constant 0 : index
    %14 = vector.load %arg2[%c312, %c0_9] : memref<416x128xf32, #tpu.memory_space<vmem>>, vector<1x32xf32>
    %15 = vector.broadcast %14 : vector<1x32xf32> to vector<8x32xf32>
    %16 = arith.addf %13, %15 : vector<8x32xf32>
    %c320 = arith.constant 320 : index
    %c0_10 = arith.constant 0 : index
    %17 = vector.load %arg2[%c320, %c0_10] : memref<416x128xf32, #tpu.memory_space<vmem>>, vector<16x32xf32>
    %cst_11 = arith.constant dense<0.000000e+00> : vector<8x32xf32>
    %18 = tpu.matmul %11, %17, %cst_11 {dimension_numbers = #tpu.dot_dimension_numbers<[1], [0], [0], [1], [0, 0, 1, 1], [], []>} : vector<8x16xf32>, vector<16x32xf32>, vector<8x32xf32> -> vector<8x32xf32>
    %c336 = arith.constant 336 : index
    %c0_12 = arith.constant 0 : index
    %19 = vector.load %arg2[%c336, %c0_12] : memref<416x128xf32, #tpu.memory_space<vmem>>, vector<1x32xf32>
    %20 = vector.broadcast %19 : vector<1x32xf32> to vector<8x32xf32>
    %21 = arith.addf %18, %20 : vector<8x32xf32>
    %c344 = arith.constant 344 : index
    %c0_13 = arith.constant 0 : index
    %22 = vector.load %arg2[%c344, %c0_13] : memref<416x128xf32, #tpu.memory_space<vmem>>, vector<16x16xf32>
    %cst_14 = arith.constant dense<0.000000e+00> : vector<8x16xf32>
    %23 = tpu.matmul %1, %22, %cst_14 {dimension_numbers = #tpu.dot_dimension_numbers<[1], [0], [0], [1], [0, 0, 1, 1], [], []>} : vector<8x16xf32>, vector<16x16xf32>, vector<8x16xf32> -> vector<8x16xf32>
    %c360 = arith.constant 360 : index
    %c0_15 = arith.constant 0 : index
    %24 = vector.load %arg2[%c360, %c0_15] : memref<416x128xf32, #tpu.memory_space<vmem>>, vector<1x16xf32>
    %25 = vector.broadcast %24 : vector<1x16xf32> to vector<8x16xf32>
    %26 = arith.addf %23, %25 : vector<8x16xf32>
    %cst_16 = arith.constant 0.000000e+00 : f32
    %27 = vector.broadcast %cst_16 : f32 to vector<8x16xf32>
    %28 = arith.cmpf oge, %26, %27 : vector<8x16xf32>
    %cst_17 = arith.constant 2.000000e-01 : f32
    %29 = vector.broadcast %cst_17 : f32 to vector<8x16xf32>
    %30 = arith.mulf %29, %26 : vector<8x16xf32>
    %31 = arith.select %28, %26, %30 : vector<8x16xi1>, vector<8x16xf32>
    %c368 = arith.constant 368 : index
    %c0_18 = arith.constant 0 : index
    %32 = vector.load %arg2[%c368, %c0_18] : memref<416x128xf32, #tpu.memory_space<vmem>>, vector<16x32xf32>
    %cst_19 = arith.constant dense<0.000000e+00> : vector<8x32xf32>
    %33 = tpu.matmul %31, %32, %cst_19 {dimension_numbers = #tpu.dot_dimension_numbers<[1], [0], [0], [1], [0, 0, 1, 1], [], []>} : vector<8x16xf32>, vector<16x32xf32>, vector<8x32xf32> -> vector<8x32xf32>
    %c384 = arith.constant 384 : index
    %c0_20 = arith.constant 0 : index
    %34 = vector.load %arg2[%c384, %c0_20] : memref<416x128xf32, #tpu.memory_space<vmem>>, vector<1x32xf32>
    %35 = vector.broadcast %34 : vector<1x32xf32> to vector<8x32xf32>
    %36 = arith.addf %33, %35 : vector<8x32xf32>
    %c392 = arith.constant 392 : index
    %c0_21 = arith.constant 0 : index
    %37 = vector.load %arg2[%c392, %c0_21] : memref<416x128xf32, #tpu.memory_space<vmem>>, vector<16x32xf32>
    %cst_22 = arith.constant dense<0.000000e+00> : vector<8x32xf32>
    %38 = tpu.matmul %31, %37, %cst_22 {dimension_numbers = #tpu.dot_dimension_numbers<[1], [0], [0], [1], [0, 0, 1, 1], [], []>} : vector<8x16xf32>, vector<16x32xf32>, vector<8x32xf32> -> vector<8x32xf32>
    %c408 = arith.constant 408 : index
    %c0_23 = arith.constant 0 : index
    %39 = vector.load %arg2[%c408, %c0_23] : memref<416x128xf32, #tpu.memory_space<vmem>>, vector<1x32xf32>
    %40 = vector.broadcast %39 : vector<1x32xf32> to vector<8x32xf32>
    %41 = arith.addf %38, %40 : vector<8x32xf32>
    %c0_24 = arith.constant 0 : index
    %c0_25 = arith.constant 0 : index
    %42 = vector.load %arg2[%c0_24, %c0_25] : memref<416x128xf32, #tpu.memory_space<vmem>>, vector<32x32xf32>
    %cst_26 = arith.constant dense<0.000000e+00> : vector<8x32xf32>
    %43 = tpu.matmul %0, %42, %cst_26 {dimension_numbers = #tpu.dot_dimension_numbers<[1], [0], [0], [1], [0, 0, 1, 1], [], []>} : vector<8x32xf32>, vector<32x32xf32>, vector<8x32xf32> -> vector<8x32xf32>
    %c32 = arith.constant 32 : index
    %c0_27 = arith.constant 0 : index
    %44 = vector.load %arg2[%c32, %c0_27] : memref<416x128xf32, #tpu.memory_space<vmem>>, vector<1x32xf32>
    %45 = vector.broadcast %44 : vector<1x32xf32> to vector<8x32xf32>
    %46 = arith.addf %43, %45 : vector<8x32xf32>
    %cst_28 = arith.constant dense<0.000000e+00> : vector<8xf32>
    %47 = vector.multi_reduction <add>, %46, %cst_28 [1] : vector<8x32xf32> to vector<8xf32>
    %48 = vector.shape_cast %47 : vector<8xf32> to vector<8x1xf32>
    %cst_29 = arith.constant 3.200000e+01 : f32
    %49 = vector.broadcast %cst_29 : f32 to vector<8x1xf32>
    %50 = arith.divf %48, %49 : vector<8x1xf32>
    %51 = vector.broadcast %50 : vector<8x1xf32> to vector<8x32xf32>
    %52 = arith.subf %46, %51 : vector<8x32xf32>
    %53 = vector.broadcast %50 : vector<8x1xf32> to vector<8x32xf32>
    %54 = arith.subf %46, %53 : vector<8x32xf32>
    %55 = arith.mulf %52, %54 : vector<8x32xf32>
    %cst_30 = arith.constant dense<0.000000e+00> : vector<8xf32>
    %56 = vector.multi_reduction <add>, %55, %cst_30 [1] : vector<8x32xf32> to vector<8xf32>
    %57 = vector.shape_cast %56 : vector<8xf32> to vector<8x1xf32>
    %cst_31 = arith.constant 3.200000e+01 : f32
    %58 = vector.broadcast %cst_31 : f32 to vector<8x1xf32>
    %59 = arith.divf %57, %58 : vector<8x1xf32>
    %60 = vector.broadcast %50 : vector<8x1xf32> to vector<8x32xf32>
    %61 = arith.subf %46, %60 : vector<8x32xf32>
    %cst_32 = arith.constant 9.99999974E-6 : f32
    %62 = vector.broadcast %cst_32 : f32 to vector<8x1xf32>
    %63 = arith.addf %59, %62 : vector<8x1xf32>
    %64 = math.rsqrt %63 : vector<8x1xf32>
    %65 = vector.broadcast %64 : vector<8x1xf32> to vector<8x32xf32>
    %66 = arith.mulf %61, %65 : vector<8x32xf32>
    %cst_33 = arith.constant 1.000000e+00 : f32
    %67 = vector.broadcast %cst_33 : f32 to vector<8x32xf32>
    %68 = arith.addf %67, %16 : vector<8x32xf32>
    %69 = arith.mulf %66, %68 : vector<8x32xf32>
    %70 = arith.addf %69, %21 : vector<8x32xf32>
    %cst_34 = arith.constant 0.000000e+00 : f32
    %71 = vector.broadcast %cst_34 : f32 to vector<8x32xf32>
    %72 = arith.cmpf oge, %70, %71 : vector<8x32xf32>
    %cst_35 = arith.constant 2.000000e-01 : f32
    %73 = vector.broadcast %cst_35 : f32 to vector<8x32xf32>
    %74 = arith.mulf %73, %70 : vector<8x32xf32>
    %75 = arith.select %72, %70, %74 : vector<8x32xi1>, vector<8x32xf32>
    %c40 = arith.constant 40 : index
    %c0_36 = arith.constant 0 : index
    %76 = vector.load %arg2[%c40, %c0_36] : memref<416x128xf32, #tpu.memory_space<vmem>>, vector<32x32xf32>
    %cst_37 = arith.constant dense<0.000000e+00> : vector<8x32xf32>
    %77 = tpu.matmul %75, %76, %cst_37 {dimension_numbers = #tpu.dot_dimension_numbers<[1], [0], [0], [1], [0, 0, 1, 1], [], []>} : vector<8x32xf32>, vector<32x32xf32>, vector<8x32xf32> -> vector<8x32xf32>
    %c72 = arith.constant 72 : index
    %c0_38 = arith.constant 0 : index
    %78 = vector.load %arg2[%c72, %c0_38] : memref<416x128xf32, #tpu.memory_space<vmem>>, vector<1x32xf32>
    %79 = vector.broadcast %78 : vector<1x32xf32> to vector<8x32xf32>
    %80 = arith.addf %77, %79 : vector<8x32xf32>
    %cst_39 = arith.constant 0.000000e+00 : f32
    %81 = vector.broadcast %cst_39 : f32 to vector<8x32xf32>
    %82 = arith.cmpf oge, %80, %81 : vector<8x32xf32>
    %cst_40 = arith.constant 2.000000e-01 : f32
    %83 = vector.broadcast %cst_40 : f32 to vector<8x32xf32>
    %84 = arith.mulf %83, %80 : vector<8x32xf32>
    %85 = arith.select %82, %80, %84 : vector<8x32xi1>, vector<8x32xf32>
    %c80 = arith.constant 80 : index
    %c0_41 = arith.constant 0 : index
    %86 = vector.load %arg2[%c80, %c0_41] : memref<416x128xf32, #tpu.memory_space<vmem>>, vector<32x32xf32>
    %cst_42 = arith.constant dense<0.000000e+00> : vector<8x32xf32>
    %87 = tpu.matmul %85, %86, %cst_42 {dimension_numbers = #tpu.dot_dimension_numbers<[1], [0], [0], [1], [0, 0, 1, 1], [], []>} : vector<8x32xf32>, vector<32x32xf32>, vector<8x32xf32> -> vector<8x32xf32>
    %c112 = arith.constant 112 : index
    %c0_43 = arith.constant 0 : index
    %88 = vector.load %arg2[%c112, %c0_43] : memref<416x128xf32, #tpu.memory_space<vmem>>, vector<1x32xf32>
    %89 = vector.broadcast %88 : vector<1x32xf32> to vector<8x32xf32>
    %90 = arith.addf %87, %89 : vector<8x32xf32>
    %cst_44 = arith.constant dense<0.000000e+00> : vector<8xf32>
    %91 = vector.multi_reduction <add>, %90, %cst_44 [1] : vector<8x32xf32> to vector<8xf32>
    %92 = vector.shape_cast %91 : vector<8xf32> to vector<8x1xf32>
    %cst_45 = arith.constant 3.200000e+01 : f32
    %93 = vector.broadcast %cst_45 : f32 to vector<8x1xf32>
    %94 = arith.divf %92, %93 : vector<8x1xf32>
    %95 = vector.broadcast %94 : vector<8x1xf32> to vector<8x32xf32>
    %96 = arith.subf %90, %95 : vector<8x32xf32>
    %97 = vector.broadcast %94 : vector<8x1xf32> to vector<8x32xf32>
    %98 = arith.subf %90, %97 : vector<8x32xf32>
    %99 = arith.mulf %96, %98 : vector<8x32xf32>
    %cst_46 = arith.constant dense<0.000000e+00> : vector<8xf32>
    %100 = vector.multi_reduction <add>, %99, %cst_46 [1] : vector<8x32xf32> to vector<8xf32>
    %101 = vector.shape_cast %100 : vector<8xf32> to vector<8x1xf32>
    %cst_47 = arith.constant 3.200000e+01 : f32
    %102 = vector.broadcast %cst_47 : f32 to vector<8x1xf32>
    %103 = arith.divf %101, %102 : vector<8x1xf32>
    %104 = vector.broadcast %94 : vector<8x1xf32> to vector<8x32xf32>
    %105 = arith.subf %90, %104 : vector<8x32xf32>
    %cst_48 = arith.constant 9.99999974E-6 : f32
    %106 = vector.broadcast %cst_48 : f32 to vector<8x1xf32>
    %107 = arith.addf %103, %106 : vector<8x1xf32>
    %108 = math.rsqrt %107 : vector<8x1xf32>
    %109 = vector.broadcast %108 : vector<8x1xf32> to vector<8x32xf32>
    %110 = arith.mulf %105, %109 : vector<8x32xf32>
    %cst_49 = arith.constant 1.000000e+00 : f32
    %111 = vector.broadcast %cst_49 : f32 to vector<8x32xf32>
    %112 = arith.addf %111, %36 : vector<8x32xf32>
    %113 = arith.mulf %110, %112 : vector<8x32xf32>
    %114 = arith.addf %113, %41 : vector<8x32xf32>
    %cst_50 = arith.constant 0.000000e+00 : f32
    %115 = vector.broadcast %cst_50 : f32 to vector<8x32xf32>
    %116 = arith.cmpf oge, %114, %115 : vector<8x32xf32>
    %cst_51 = arith.constant 2.000000e-01 : f32
    %117 = vector.broadcast %cst_51 : f32 to vector<8x32xf32>
    %118 = arith.mulf %117, %114 : vector<8x32xf32>
    %119 = arith.select %116, %114, %118 : vector<8x32xi1>, vector<8x32xf32>
    %c120 = arith.constant 120 : index
    %c0_52 = arith.constant 0 : index
    %120 = vector.load %arg2[%c120, %c0_52] : memref<416x128xf32, #tpu.memory_space<vmem>>, vector<32x64xf32>
    %cst_53 = arith.constant dense<0.000000e+00> : vector<8x64xf32>
    %121 = tpu.matmul %119, %120, %cst_53 {dimension_numbers = #tpu.dot_dimension_numbers<[1], [0], [0], [1], [0, 0, 1, 1], [], []>} : vector<8x32xf32>, vector<32x64xf32>, vector<8x64xf32> -> vector<8x64xf32>
    %c152 = arith.constant 152 : index
    %c0_54 = arith.constant 0 : index
    %122 = vector.load %arg2[%c152, %c0_54] : memref<416x128xf32, #tpu.memory_space<vmem>>, vector<1x64xf32>
    %123 = vector.broadcast %122 : vector<1x64xf32> to vector<8x64xf32>
    %124 = arith.addf %121, %123 : vector<8x64xf32>
    %cst_55 = arith.constant 0.000000e+00 : f32
    %125 = vector.broadcast %cst_55 : f32 to vector<8x64xf32>
    %126 = arith.cmpf oge, %124, %125 : vector<8x64xf32>
    %cst_56 = arith.constant 2.000000e-01 : f32
    %127 = vector.broadcast %cst_56 : f32 to vector<8x64xf32>
    %128 = arith.mulf %127, %124 : vector<8x64xf32>
    %129 = arith.select %126, %124, %128 : vector<8x64xi1>, vector<8x64xf32>
    %c160 = arith.constant 160 : index
    %c0_57 = arith.constant 0 : index
    %130 = vector.load %arg2[%c160, %c0_57] : memref<416x128xf32, #tpu.memory_space<vmem>>, vector<64x32xf32>
    %cst_58 = arith.constant dense<0.000000e+00> : vector<8x32xf32>
    %131 = tpu.matmul %129, %130, %cst_58 {dimension_numbers = #tpu.dot_dimension_numbers<[1], [0], [0], [1], [0, 0, 1, 1], [], []>} : vector<8x64xf32>, vector<64x32xf32>, vector<8x32xf32> -> vector<8x32xf32>
    %c224 = arith.constant 224 : index
    %c0_59 = arith.constant 0 : index
    %132 = vector.load %arg2[%c224, %c0_59] : memref<416x128xf32, #tpu.memory_space<vmem>>, vector<1x32xf32>
    %133 = vector.broadcast %132 : vector<1x32xf32> to vector<8x32xf32>
    %134 = arith.addf %131, %133 : vector<8x32xf32>
    %cst_60 = arith.constant 0.000000e+00 : f32
    %135 = vector.broadcast %cst_60 : f32 to vector<8x32xf32>
    %136 = arith.cmpf oge, %134, %135 : vector<8x32xf32>
    %cst_61 = arith.constant 2.000000e-01 : f32
    %137 = vector.broadcast %cst_61 : f32 to vector<8x32xf32>
    %138 = arith.mulf %137, %134 : vector<8x32xf32>
    %139 = arith.select %136, %134, %138 : vector<8x32xi1>, vector<8x32xf32>
    %c232 = arith.constant 232 : index
    %c0_62 = arith.constant 0 : index
    %140 = vector.load %arg2[%c232, %c0_62] : memref<416x128xf32, #tpu.memory_space<vmem>>, vector<32x32xf32>
    %cst_63 = arith.constant dense<0.000000e+00> : vector<8x32xf32>
    %141 = tpu.matmul %139, %140, %cst_63 {dimension_numbers = #tpu.dot_dimension_numbers<[1], [0], [0], [1], [0, 0, 1, 1], [], []>} : vector<8x32xf32>, vector<32x32xf32>, vector<8x32xf32> -> vector<8x32xf32>
    %c264 = arith.constant 264 : index
    %c0_64 = arith.constant 0 : index
    %142 = vector.load %arg2[%c264, %c0_64] : memref<416x128xf32, #tpu.memory_space<vmem>>, vector<1x32xf32>
    %143 = vector.broadcast %142 : vector<1x32xf32> to vector<8x32xf32>
    %144 = arith.addf %141, %143 : vector<8x32xf32>
    %145 = arith.negf %144 : vector<8x32xf32>
    %146 = math.exp %145 : vector<8x32xf32>
    %cst_65 = arith.constant 1.000000e+00 : f32
    %147 = vector.broadcast %cst_65 : f32 to vector<8x32xf32>
    %148 = arith.addf %147, %146 : vector<8x32xf32>
    %149 = arith.divf %147, %148 : vector<8x32xf32>
    %c0_66 = arith.constant 0 : index
    %c0_67 = arith.constant 0 : index
    %150 = vector.load %arg3[%c0_66, %c0_67] : memref<8x32xf32, #tpu.memory_space<vmem>>, vector<8x32xf32>
    tpu.vector_store %arg3[%c0_66, %c0_67], %149 {strides = array<i32>} : memref<8x32xf32, #tpu.memory_space<vmem>>, vector<8x32xf32>,
    return
  }
}

</mosaic_0001>

<llo_original>
// kernel: tpu_custom_call.1
$region0: #{tpu_custom_call.1}
  #allocation0 [shape = 'u32[]', space=smem, size = 0x4, offset = 0x4, fixed_abs, tag = 'smem constant byte address 0x4 - core index']
  #allocation1 [shape = 'u32[144,128]{1,0:T(1,128)}', space=vmem, size = 0x12000, scoped, tag = 'internal scratch']
  %s0 = inlined_call_operand.hbm [shape: f32[8,32], index: 0, kind: input, shape index: {}]
  %s1 = inlined_call_operand.hbm [shape: f32[8,16], index: 1, kind: input, shape index: {}]
  %s2 = inlined_call_operand.hbm [shape: f32[416,128], index: 2, kind: input, shape index: {}]
  %s3 = inlined_call_operand.hbm [shape: f32[8,32], index: 3, kind: output, shape index: {}]
  %s4 = sld [smem:[#allocation0]]
  $region34: #{tpu_custom_call.1} parent=0
    _
  %s6 = ssub.s32 1, %s4
  %s7 = scalar_select 0, %s6, %s4
  $region1: #{tpu_custom_call.1} parent=0
    #allocation2 [shape = 'u8[4096]{0}', space=vmem, size = 0x1000, scoped, tag = 'input window, operand 0, single buffered']
    #allocation3 [shape = 's32[1]{0}', space=sflag, size = 0x4, scoped, tag = 'scoped memory for tpu_custom_call.1']
    #allocation4 [shape = 's32[1]{0}', space=sflag, size = 0x4, scoped, tag = 'scoped memory for tpu_custom_call.1']
    #allocation5 [shape = 'u8[4096]{0}', space=vmem, size = 0x1000, scoped, tag = 'input window, operand 1, single buffered']
    #allocation6 [shape = 's32[1]{0}', space=sflag, size = 0x4, scoped, tag = 'scoped memory for tpu_custom_call.1']
    #allocation7 [shape = 'u8[212992]{0}', space=vmem, size = 0x34000, scoped, tag = 'input window, operand 2, single buffered']
    #allocation8 [shape = 'u8[4096]{0}', space=vmem, size = 0x1000, scoped, tag = 'output window, operand 0, single buffered']
    %8 = vsyncpa [#allocation3], 0
    %9 = vsyncpa [#allocation6], 0
    %10 = vsyncpa [#allocation4], 0
    // Predicated region
    $region2: #{tpu_custom_call.1} parent=1 // pred_check
      _
    $region3: #{tpu_custom_call.1} parent=1 // pred_check_branch
      %12 = sbr.rel (0) target = $region5
    $region4: #{tpu_custom_call.1} parent=1 // pred_region
      %s14 = ssub.s32 128, 128
      %15 = vsyncadd [#allocation3], %s14
      %s17 = sshll.u32 [#allocation2], 4
      %s18 = int_to_ptr.vmem [resolvable:$true] %s17
      %20 = dma.hbm_to_vmem [thread:$0]  %s0, 128, %s18, [#allocation3]
    $region5: #{tpu_custom_call.1} parent=1 // pred_fallthru
      _
    // Predicated region
    $region6: #{tpu_custom_call.1} parent=1 // pred_check
      _
    $region7: #{tpu_custom_call.1} parent=1 // pred_check_branch
      %22 = sbr.rel (0) target = $region9
    $region8: #{tpu_custom_call.1} parent=1 // pred_region
      %s24 = ssub.s32 128, 128
      %25 = vsyncadd [#allocation6], %s24
      %s27 = sshll.u32 [#allocation5], 4
      %s28 = int_to_ptr.vmem [resolvable:$true] %s27
      %30 = dma.hbm_to_vmem [thread:$0]  %s1, 128, %s28, [#allocation6]
    $region9: #{tpu_custom_call.1} parent=1 // pred_fallthru
      _
    // Predicated region
    $region10: #{tpu_custom_call.1} parent=1 // pred_check
      _
    $region11: #{tpu_custom_call.1} parent=1 // pred_check_branch
      %32 = sbr.rel (0) target = $region13
    $region12: #{tpu_custom_call.1} parent=1 // pred_region
      %s34 = ssub.s32 6656, 6656
      %35 = vsyncadd [#allocation6], %s34
      %s36 = sshll.u32 [#allocation7], 4
      %s37 = int_to_ptr.vmem [resolvable:$true] %s36
      %42 = dma.hbm_to_vmem [thread:$0]  %s2, 6656, %s37, [#allocation6], 128, 128, 8
    $region13: #{tpu_custom_call.1} parent=1 // pred_fallthru
      _
    // Predicated region
    $region14: #{tpu_custom_call.1} parent=1 // pred_check
      _
    $region15: #{tpu_custom_call.1} parent=1 // pred_check_branch
      %44 = sbr.rel (0) target = $region17
    $region16: #{tpu_custom_call.1} parent=1 // pred_region
      %45 = dma.done [#allocation3], 128
    $region17: #{tpu_custom_call.1} parent=1 // pred_fallthru
      _
    // Predicated region
    $region18: #{tpu_custom_call.1} parent=1 // pred_check
      _
    $region19: #{tpu_custom_call.1} parent=1 // pred_check_branch
      %47 = sbr.rel (0) target = $region21
    $region20: #{tpu_custom_call.1} parent=1 // pred_region
      %48 = dma.done [#allocation6], 128
    $region21: #{tpu_custom_call.1} parent=1 // pred_fallthru
      _
    // Predicated region
    $region22: #{tpu_custom_call.1} parent=1 // pred_check
      _
    $region23: #{tpu_custom_call.1} parent=1 // pred_check_branch
      %50 = sbr.rel (0) target = $region25
    $region24: #{tpu_custom_call.1} parent=1 // pred_region
      %51 = dma.done [#allocation6], 6656
    $region25: #{tpu_custom_call.1} parent=1 // pred_fallthru
      _
    %v52 = vld [vmem:[#allocation2] sm:$0xff]
    %v53 = vld [vmem:[#allocation5] sm:$0xff]
    %v54 = vld [vmem:[#allocation7 + $0x110] sm:$0xff]
    %v55 = vld [vmem:[#allocation7 + $0x118] sm:$0xff]
    %v56 = vld [vmem:[#allocation7 + $0x120] sm:$0x1]
    %v57 = vlaneseq
    %v58 = vshrl.u32 %v57, 7
    %v59 = vsub.s32 0, %v58
    %v60 = vrot.slane %v56, %v59
    %vm61 = vcmask 130048
    %v63 = vsel %vm61, %v53, 0
    %65 = vmatprep.subr.mxu0 0.0
    %66 = vmatpush1.msra.mxu0 %v54
    %67 = vmatprep.subr.mxu0 0.0
    %68 = vmatpush1.msra.mxu0 %v55
    %69 = vmatprep.subr.mxu0 0.0
    %70 = vmatpush1.msra.mxu0 0.0
    %71 = vmatprep.subr.mxu0 0.0
    %72 = vmatpush1.msra.mxu0 0.0
    %73 = vmatprep.subr.mxu0 0.0
    %74 = vmatpush1.msra.mxu0 0.0
    %75 = vmatprep.subr.mxu0 0.0
    %76 = vmatpush1.msra.mxu0 0.0
    %77 = vmatprep.subr.mxu0 0.0
    %78 = vmatpush1.msra.mxu0 0.0
    %79 = vmatprep.subr.mxu0 0.0
    %80 = vmatpush1.msra.mxu0 0.0
    %81 = vmatprep.subr.mxu0 0.0
    %82 = vmatpush1.msra.mxu0 0.0
    %83 = vmatprep.subr.mxu0 0.0
    %84 = vmatpush1.msra.mxu0 0.0
    %85 = vmatprep.subr.mxu0 0.0
    %86 = vmatpush1.msra.mxu0 0.0
    %87 = vmatprep.subr.mxu0 0.0
    %88 = vmatpush1.msra.mxu0 0.0
    %89 = vmatprep.subr.mxu0 0.0
    %90 = vmatpush1.msra.mxu0 0.0
    %91 = vmatprep.subr.mxu0 0.0
    %92 = vmatpush1.msra.mxu0 0.0
    %93 = vmatprep.subr.mxu0 0.0
    %94 = vmatpush1.msra.mxu0 0.0
    %95 = vmatprep.subr.mxu0 0.0
    %96 = vmatpush1.msra.mxu0 0.0
    %97 = vmatprep.subr.mxu0 0.0
    %98 = vmatpush1.msra.mxu0 0.0
    %99 = vmatprep.subr.mxu0 0.0
    %100 = vmatpush1.msra.mxu0 0.0
    %101 = vmatprep.subr.mxu0 0.0
    %102 = vmatpush1.msra.mxu0 0.0
    %103 = vmatprep.subr.mxu0 0.0
    %104 = vmatpush1.msra.mxu0 0.0
    %105 = vmatprep.subr.mxu0 0.0
    %106 = vmatpush1.msra.mxu0 0.0
    %107 = vmatprep.subr.mxu0 0.0
    %108 = vmatpush1.msra.mxu0 0.0
    %109 = vmatprep.subr.mxu0 0.0
    %110 = vmatpush1.msra.mxu0 0.0
    %111 = vmatprep.subr.mxu0 0.0
    %112 = vmatpush1.msra.mxu0 0.0
    %113 = vmatprep.subr.mxu0 0.0
    %114 = vmatpush1.msra.mxu0 0.0
    %115 = vmatprep.subr.mxu0 0.0
    %116 = vmatpush1.msra.mxu0 0.0
    %117 = vmatprep.subr.mxu0 0.0
    %118 = vmatpush1.msra.mxu0 0.0
    %119 = vmatprep.subr.mxu0 0.0
    %120 = vmatpush1.msra.mxu0 0.0
    %121 = vmatprep.subr.mxu0 0.0
    %122 = vmatpush1.msra.mxu0 0.0
    %123 = vmatprep.subr.mxu0 0.0
    %124 = vmatpush1.msra.mxu0 0.0
    %125 = vmatprep.subr.mxu0 0.0
    %126 = vmatpush1.msra.mxu0 0.0
    %127 = vmatprep.subr.mxu0 0.0
    %128 = vmatpush1.msra.mxu0 0.0
    %129 = vmatprep.mubr.f32.mxu0 0.0
    %130 = vmatmul.mubr.f32.gmra.mrb[0].mxu0 %v63
    %v131 = vpop.f32.mrb[0].mxu0
    %v132 = vadd.f32 %v60, %v131
    %v133 = vpop.f32.mrb[0].mxu0
    %134 = vdwg.mxu0
    %vm135 = vcmp.ge.f32.partialorder %v132, 0.0
    %v136 = vmul.f32 %v132, 0.2
    %v137 = vsel %vm135, %v132, %v136
    %v138 = vld [vmem:[#allocation7 + $0x128] sm:$0xff]
    %v139 = vld [vmem:[#allocation7 + $0x130] sm:$0xff]
    %v140 = vld [vmem:[#allocation7 + $0x138] sm:$0x1]
    %v141 = vlaneseq
    %v142 = vshrl.u32 %v141, 7
    %v143 = vsub.s32 0, %v142
    %v144 = vrot.slane %v140, %v143
    %v146 = vsel %vm61, %v137, 0
    %148 = vmatprep.subr.mxu0 0.0
    %149 = vmatpush1.msra.mxu0 %v138
    %150 = vmatprep.subr.mxu0 0.0
    %151 = vmatpush1.msra.mxu0 %v139
    %152 = vmatprep.subr.mxu0 0.0
    %153 = vmatpush1.msra.mxu0 0.0
    %154 = vmatprep.subr.mxu0 0.0
    %155 = vmatpush1.msra.mxu0 0.0
    %156 = vmatprep.subr.mxu0 0.0
    %157 = vmatpush1.msra.mxu0 0.0
    %158 = vmatprep.subr.mxu0 0.0
    %159 = vmatpush1.msra.mxu0 0.0
    %160 = vmatprep.subr.mxu0 0.0
    %161 = vmatpush1.msra.mxu0 0.0
    %162 = vmatprep.subr.mxu0 0.0
    %163 = vmatpush1.msra.mxu0 0.0
    %164 = vmatprep.subr.mxu0 0.0
    %165 = vmatpush1.msra.mxu0 0.0
    %166 = vmatprep.subr.mxu0 0.0
    %167 = vmatpush1.msra.mxu0 0.0
    %168 = vmatprep.subr.mxu0 0.0
    %169 = vmatpush1.msra.mxu0 0.0
    %170 = vmatprep.subr.mxu0 0.0
    %171 = vmatpush1.msra.mxu0 0.0
    %172 = vmatprep.subr.mxu0 0.0
    %173 = vmatpush1.msra.mxu0 0.0
    %174 = vmatprep.subr.mxu0 0.0
    %175 = vmatpush1.msra.mxu0 0.0
    %176 = vmatprep.subr.mxu0 0.0
    %177 = vmatpush1.msra.mxu0 0.0
    %178 = vmatprep.subr.mxu0 0.0
    %179 = vmatpush1.msra.mxu0 0.0
    %180 = vmatprep.subr.mxu0 0.0
    %181 = vmatpush1.msra.mxu0 0.0
    %182 = vmatprep.subr.mxu0 0.0
    %183 = vmatpush1.msra.mxu0 0.0
    %184 = vmatprep.subr.mxu0 0.0
    %185 = vmatpush1.msra.mxu0 0.0
    %186 = vmatprep.subr.mxu0 0.0
    %187 = vmatpush1.msra.mxu0 0.0
    %188 = vmatprep.subr.mxu0 0.0
    %189 = vmatpush1.msra.mxu0 0.0
    %190 = vmatprep.subr.mxu0 0.0
    %191 = vmatpush1.msra.mxu0 0.0
    %192 = vmatprep.subr.mxu0 0.0
    %193 = vmatpush1.msra.mxu0 0.0
    %194 = vmatprep.subr.mxu0 0.0
    %195 = vmatpush1.msra.mxu0 0.0
    %196 = vmatprep.subr.mxu0 0.0
    %197 = vmatpush1.msra.mxu0 0.0
    %198 = vmatprep.subr.mxu0 0.0
    %199 = vmatpush1.msra.mxu0 0.0
    %200 = vmatprep.subr.mxu0 0.0
    %201 = vmatpush1.msra.mxu0 0.0
    %202 = vmatprep.subr.mxu0 0.0
    %203 = vmatpush1.msra.mxu0 0.0
    %204 = vmatprep.subr.mxu0 0.0
    %205 = vmatpush1.msra.mxu0 0.0
    %206 = vmatprep.subr.mxu0 0.0
    %207 = vmatpush1.msra.mxu0 0.0
    %208 = vmatprep.subr.mxu0 0.0
    %209 = vmatpush1.msra.mxu0 0.0
    %210 = vmatprep.subr.mxu0 0.0
    %211 = vmatpush1.msra.mxu0 0.0
    %212 = vmatprep.mubr.f32.mxu0 0.0
    %213 = vmatmul.mubr.f32.gmra.mrb[0].mxu0 %v146
    %v214 = vpop.f32.mrb[0].mxu0
    %v215 = vadd.f32 %v144, %v214
    %v216 = vpop.f32.mrb[0].mxu0
    %217 = vdwg.mxu0
    %v218 = vld [vmem:[#allocation7 + $0x140] sm:$0xff]
    %v219 = vld [vmem:[#allocation7 + $0x148] sm:$0xff]
    %v220 = vld [vmem:[#allocation7 + $0x150] sm:$0x1]
    %v221 = vlaneseq
    %v222 = vshrl.u32 %v221, 7
    %v223 = vsub.s32 0, %v222
    %v224 = vrot.slane %v220, %v223
    %225 = vmatprep.subr.mxu0 0.0
    %226 = vmatpush1.msra.mxu0 %v218
    %227 = vmatprep.subr.mxu0 0.0
    %228 = vmatpush1.msra.mxu0 %v219
    %229 = vmatprep.subr.mxu0 0.0
    %230 = vmatpush1.msra.mxu0 0.0
    %231 = vmatprep.subr.mxu0 0.0
    %232 = vmatpush1.msra.mxu0 0.0
    %233 = vmatprep.subr.mxu0 0.0
    %234 = vmatpush1.msra.mxu0 0.0
    %235 = vmatprep.subr.mxu0 0.0
    %236 = vmatpush1.msra.mxu0 0.0
    %237 = vmatprep.subr.mxu0 0.0
    %238 = vmatpush1.msra.mxu0 0.0
    %239 = vmatprep.subr.mxu0 0.0
    %240 = vmatpush1.msra.mxu0 0.0
    %241 = vmatprep.subr.mxu0 0.0
    %242 = vmatpush1.msra.mxu0 0.0
    %243 = vmatprep.subr.mxu0 0.0
    %244 = vmatpush1.msra.mxu0 0.0
    %245 = vmatprep.subr.mxu0 0.0
    %246 = vmatpush1.msra.mxu0 0.0
    %247 = vmatprep.subr.mxu0 0.0
    %248 = vmatpush1.msra.mxu0 0.0
    %249 = vmatprep.subr.mxu0 0.0
    %250 = vmatpush1.msra.mxu0 0.0
    %251 = vmatprep.subr.mxu0 0.0
    %252 = vmatpush1.msra.mxu0 0.0
    %253 = vmatprep.subr.mxu0 0.0
    %254 = vmatpush1.msra.mxu0 0.0
    %255 = vmatprep.subr.mxu0 0.0
    %256 = vmatpush1.msra.mxu0 0.0
    %257 = vmatprep.subr.mxu0 0.0
    %258 = vmatpush1.msra.mxu0 0.0
    %259 = vmatprep.subr.mxu0 0.0
    %260 = vmatpush1.msra.mxu0 0.0
    %261 = vmatprep.subr.mxu0 0.0
    %262 = vmatpush1.msra.mxu0 0.0
    %263 = vmatprep.subr.mxu0 0.0
    %264 = vmatpush1.msra.mxu0 0.0
    %265 = vmatprep.subr.mxu0 0.0
    %266 = vmatpush1.msra.mxu0 0.0
    %267 = vmatprep.subr.mxu0 0.0
    %268 = vmatpush1.msra.mxu0 0.0
    %269 = vmatprep.subr.mxu0 0.0
    %270 = vmatpush1.msra.mxu0 0.0
    %271 = vmatprep.subr.mxu0 0.0
    %272 = vmatpush1.msra.mxu0 0.0
    %273 = vmatprep.subr.mxu0 0.0
    %274 = vmatpush1.msra.mxu0 0.0
    %275 = vmatprep.subr.mxu0 0.0
    %276 = vmatpush1.msra.mxu0 0.0
    %277 = vmatprep.subr.mxu0 0.0
    %278 = vmatpush1.msra.mxu0 0.0
    %279 = vmatprep.subr.mxu0 0.0
    %280 = vmatpush1.msra.mxu0 0.0
    %281 = vmatprep.subr.mxu0 0.0
    %282 = vmatpush1.msra.mxu0 0.0
    %283 = vmatprep.subr.mxu0 0.0
    %284 = vmatpush1.msra.mxu0 0.0
    %285 = vmatprep.subr.mxu0 0.0
    %286 = vmatpush1.msra.mxu0 0.0
    %287 = vmatprep.subr.mxu0 0.0
    %288 = vmatpush1.msra.mxu0 0.0
    %289 = vmatprep.mubr.f32.mxu0 0.0
    %290 = vmatmul.mubr.f32.gmra.mrb[0].mxu0 %v146
    %v291 = vpop.f32.mrb[0].mxu0
    %v292 = vadd.f32 %v224, %v291
    %v293 = vpop.f32.mrb[0].mxu0
    %294 = vdwg.mxu0
    %v295 = vld [vmem:[#allocation7 + $0x158] sm:$0xff]
    %v296 = vld [vmem:[#allocation7 + $0x160] sm:$0xff]
    %v297 = vld [vmem:[#allocation7 + $0x168] sm:$0x1]
    %v298 = vlaneseq
    %v299 = vshrl.u32 %v298, 7
    %v300 = vsub.s32 0, %v299
    %v301 = vrot.slane %v297, %v300
    %302 = vmatprep.subr.mxu0 0.0
    %303 = vmatpush1.msra.mxu0 %v295
    %304 = vmatprep.subr.mxu0 0.0
    %305 = vmatpush1.msra.mxu0 %v296
    %306 = vmatprep.subr.mxu0 0.0
    %307 = vmatpush1.msra.mxu0 0.0
    %308 = vmatprep.subr.mxu0 0.0
    %309 = vmatpush1.msra.mxu0 0.0
    %310 = vmatprep.subr.mxu0 0.0
    %311 = vmatpush1.msra.mxu0 0.0
    %312 = vmatprep.subr.mxu0 0.0
    %313 = vmatpush1.msra.mxu0 0.0
    %314 = vmatprep.subr.mxu0 0.0
    %315 = vmatpush1.msra.mxu0 0.0
    %316 = vmatprep.subr.mxu0 0.0
    %317 = vmatpush1.msra.mxu0 0.0
    %318 = vmatprep.subr.mxu0 0.0
    %319 = vmatpush1.msra.mxu0 0.0
    %320 = vmatprep.subr.mxu0 0.0
    %321 = vmatpush1.msra.mxu0 0.0
    %322 = vmatprep.subr.mxu0 0.0
    %323 = vmatpush1.msra.mxu0 0.0
    %324 = vmatprep.subr.mxu0 0.0
    %325 = vmatpush1.msra.mxu0 0.0
    %326 = vmatprep.subr.mxu0 0.0
    %327 = vmatpush1.msra.mxu0 0.0
    %328 = vmatprep.subr.mxu0 0.0
    %329 = vmatpush1.msra.mxu0 0.0
    %330 = vmatprep.subr.mxu0 0.0
    %331 = vmatpush1.msra.mxu0 0.0
    %332 = vmatprep.subr.mxu0 0.0
    %333 = vmatpush1.msra.mxu0 0.0
    %334 = vmatprep.subr.mxu0 0.0
    %335 = vmatpush1.msra.mxu0 0.0
    %336 = vmatprep.subr.mxu0 0.0
    %337 = vmatpush1.msra.mxu0 0.0
    %338 = vmatprep.subr.mxu0 0.0
    %339 = vmatpush1.msra.mxu0 0.0
    %340 = vmatprep.subr.mxu0 0.0
    %341 = vmatpush1.msra.mxu0 0.0
    %342 = vmatprep.subr.mxu0 0.0
    %343 = vmatpush1.msra.mxu0 0.0
    %344 = vmatprep.subr.mxu0 0.0
    %345 = vmatpush1.msra.mxu0 0.0
    %346 = vmatprep.subr.mxu0 0.0
    %347 = vmatpush1.msra.mxu0 0.0
    %348 = vmatprep.subr.mxu0 0.0
    %349 = vmatpush1.msra.mxu0 0.0
    %350 = vmatprep.subr.mxu0 0.0
    %351 = vmatpush1.msra.mxu0 0.0
    %352 = vmatprep.subr.mxu0 0.0
    %353 = vmatpush1.msra.mxu0 0.0
    %354 = vmatprep.subr.mxu0 0.0
    %355 = vmatpush1.msra.mxu0 0.0
    %356 = vmatprep.subr.mxu0 0.0
    %357 = vmatpush1.msra.mxu0 0.0
    %358 = vmatprep.subr.mxu0 0.0
    %359 = vmatpush1.msra.mxu0 0.0
    %360 = vmatprep.subr.mxu0 0.0
    %361 = vmatpush1.msra.mxu0 0.0
    %362 = vmatprep.subr.mxu0 0.0
    %363 = vmatpush1.msra.mxu0 0.0
    %364 = vmatprep.subr.mxu0 0.0
    %365 = vmatpush1.msra.mxu0 0.0
    %366 = vmatprep.mubr.f32.mxu0 0.0
    %367 = vmatmul.mubr.f32.gmra.mrb[0].mxu0 %v63
    %v368 = vpop.f32.mrb[0].mxu0
    %v369 = vadd.f32 %v301, %v368
    %v370 = vpop.f32.mrb[0].mxu0
    %371 = vdwg.mxu0
    %vm372 = vcmp.ge.f32.partialorder %v369, 0.0
    %v373 = vmul.f32 %v369, 0.2
    %v374 = vsel %vm372, %v369, %v373
    %v375 = vld [vmem:[#allocation7 + $0x170] sm:$0xff]
    %v376 = vld [vmem:[#allocation7 + $0x178] sm:$0xff]
    %v377 = vld [vmem:[#allocation7 + $0x180] sm:$0x1]
    %v378 = vlaneseq
    %v379 = vshrl.u32 %v378, 7
    %v380 = vsub.s32 0, %v379
    %v381 = vrot.slane %v377, %v380
    %v383 = vsel %vm61, %v374, 0
    %385 = vmatprep.subr.mxu0 0.0
    %386 = vmatpush1.msra.mxu0 %v375
    %387 = vmatprep.subr.mxu0 0.0
    %388 = vmatpush1.msra.mxu0 %v376
    %389 = vmatprep.subr.mxu0 0.0
    %390 = vmatpush1.msra.mxu0 0.0
    %391 = vmatprep.subr.mxu0 0.0
    %392 = vmatpush1.msra.mxu0 0.0
    %393 = vmatprep.subr.mxu0 0.0
    %394 = vmatpush1.msra.mxu0 0.0
    %395 = vmatprep.subr.mxu0 0.0
    %396 = vmatpush1.msra.mxu0 0.0
    %397 = vmatprep.subr.mxu0 0.0
    %398 = vmatpush1.msra.mxu0 0.0
    %399 = vmatprep.subr.mxu0 0.0
    %400 = vmatpush1.msra.mxu0 0.0
    %401 = vmatprep.subr.mxu0 0.0
    %402 = vmatpush1.msra.mxu0 0.0
    %403 = vmatprep.subr.mxu0 0.0
    %404 = vmatpush1.msra.mxu0 0.0
    %405 = vmatprep.subr.mxu0 0.0
    %406 = vmatpush1.msra.mxu0 0.0
    %407 = vmatprep.subr.mxu0 0.0
    %408 = vmatpush1.msra.mxu0 0.0
    %409 = vmatprep.subr.mxu0 0.0
    %410 = vmatpush1.msra.mxu0 0.0
    %411 = vmatprep.subr.mxu0 0.0
    %412 = vmatpush1.msra.mxu0 0.0
    %413 = vmatprep.subr.mxu0 0.0
    %414 = vmatpush1.msra.mxu0 0.0
    %415 = vmatprep.subr.mxu0 0.0
    %416 = vmatpush1.msra.mxu0 0.0
    %417 = vmatprep.subr.mxu0 0.0
    %418 = vmatpush1.msra.mxu0 0.0
    %419 = vmatprep.subr.mxu0 0.0
    %420 = vmatpush1.msra.mxu0 0.0
    %421 = vmatprep.subr.mxu0 0.0
    %422 = vmatpush1.msra.mxu0 0.0
    %423 = vmatprep.subr.mxu0 0.0
    %424 = vmatpush1.msra.mxu0 0.0
    %425 = vmatprep.subr.mxu0 0.0
    %426 = vmatpush1.msra.mxu0 0.0
    %427 = vmatprep.subr.mxu0 0.0
    %428 = vmatpush1.msra.mxu0 0.0
    %429 = vmatprep.subr.mxu0 0.0
    %430 = vmatpush1.msra.mxu0 0.0
    %431 = vmatprep.subr.mxu0 0.0
    %432 = vmatpush1.msra.mxu0 0.0
    %433 = vmatprep.subr.mxu0 0.0
    %434 = vmatpush1.msra.mxu0 0.0
    %435 = vmatprep.subr.mxu0 0.0
    %436 = vmatpush1.msra.mxu0 0.0
    %437 = vmatprep.subr.mxu0 0.0
    %438 = vmatpush1.msra.mxu0 0.0
    %439 = vmatprep.subr.mxu0 0.0
    %440 = vmatpush1.msra.mxu0 0.0
    %441 = vmatprep.subr.mxu0 0.0
    %442 = vmatpush1.msra.mxu0 0.0
    %443 = vmatprep.subr.mxu0 0.0
    %444 = vmatpush1.msra.mxu0 0.0
    %445 = vmatprep.subr.mxu0 0.0
    %446 = vmatpush1.msra.mxu0 0.0
    %447 = vmatprep.subr.mxu0 0.0
    %448 = vmatpush1.msra.mxu0 0.0
    %449 = vmatprep.mubr.f32.mxu0 0.0
    %450 = vmatmul.mubr.f32.gmra.mrb[0].mxu0 %v383
    %v451 = vpop.f32.mrb[0].mxu0
    %v452 = vadd.f32 %v381, %v451
    %v453 = vpop.f32.mrb[0].mxu0
    %454 = vdwg.mxu0
    %v455 = vld [vmem:[#allocation7 + $0x188] sm:$0xff]
    %v456 = vld [vmem:[#allocation7 + $0x190] sm:$0xff]
    %v457 = vld [vmem:[#allocation7 + $0x198] sm:$0x1]
    %v458 = vlaneseq
    %v459 = vshrl.u32 %v458, 7
    %v460 = vsub.s32 0, %v459
    %v461 = vrot.slane %v457, %v460
    %462 = vmatprep.subr.mxu0 0.0
    %463 = vmatpush1.msra.mxu0 %v455
    %464 = vmatprep.subr.mxu0 0.0
    %465 = vmatpush1.msra.mxu0 %v456
    %466 = vmatprep.subr.mxu0 0.0
    %467 = vmatpush1.msra.mxu0 0.0
    %468 = vmatprep.subr.mxu0 0.0
    %469 = vmatpush1.msra.mxu0 0.0
    %470 = vmatprep.subr.mxu0 0.0
    %471 = vmatpush1.msra.mxu0 0.0
    %472 = vmatprep.subr.mxu0 0.0
    %473 = vmatpush1.msra.mxu0 0.0
    %474 = vmatprep.subr.mxu0 0.0
    %475 = vmatpush1.msra.mxu0 0.0
    %476 = vmatprep.subr.mxu0 0.0
    %477 = vmatpush1.msra.mxu0 0.0
    %478 = vmatprep.subr.mxu0 0.0
    %479 = vmatpush1.msra.mxu0 0.0
    %480 = vmatprep.subr.mxu0 0.0
    %481 = vmatpush1.msra.mxu0 0.0
    %482 = vmatprep.subr.mxu0 0.0
    %483 = vmatpush1.msra.mxu0 0.0
    %484 = vmatprep.subr.mxu0 0.0
    %485 = vmatpush1.msra.mxu0 0.0
    %486 = vmatprep.subr.mxu0 0.0
    %487 = vmatpush1.msra.mxu0 0.0
    %488 = vmatprep.subr.mxu0 0.0
    %489 = vmatpush1.msra.mxu0 0.0
    %490 = vmatprep.subr.mxu0 0.0
    %491 = vmatpush1.msra.mxu0 0.0
    %492 = vmatprep.subr.mxu0 0.0
    %493 = vmatpush1.msra.mxu0 0.0
    %494 = vmatprep.subr.mxu0 0.0
    %495 = vmatpush1.msra.mxu0 0.0
    %496 = vmatprep.subr.mxu0 0.0
    %497 = vmatpush1.msra.mxu0 0.0
    %498 = vmatprep.subr.mxu0 0.0
    %499 = vmatpush1.msra.mxu0 0.0
    %500 = vmatprep.subr.mxu0 0.0
    %501 = vmatpush1.msra.mxu0 0.0
    %502 = vmatprep.subr.mxu0 0.0
    %503 = vmatpush1.msra.mxu0 0.0
    %504 = vmatprep.subr.mxu0 0.0
    %505 = vmatpush1.msra.mxu0 0.0
    %506 = vmatprep.subr.mxu0 0.0
    %507 = vmatpush1.msra.mxu0 0.0
    %508 = vmatprep.subr.mxu0 0.0
    %509 = vmatpush1.msra.mxu0 0.0
    %510 = vmatprep.subr.mxu0 0.0
    %511 = vmatpush1.msra.mxu0 0.0
    %512 = vmatprep.subr.mxu0 0.0
    %513 = vmatpush1.msra.mxu0 0.0
    %514 = vmatprep.subr.mxu0 0.0
    %515 = vmatpush1.msra.mxu0 0.0
    %516 = vmatprep.subr.mxu0 0.0
    %517 = vmatpush1.msra.mxu0 0.0
    %518 = vmatprep.subr.mxu0 0.0
    %519 = vmatpush1.msra.mxu0 0.0
    %520 = vmatprep.subr.mxu0 0.0
    %521 = vmatpush1.msra.mxu0 0.0
    %522 = vmatprep.subr.mxu0 0.0
    %523 = vmatpush1.msra.mxu0 0.0
    %524 = vmatprep.subr.mxu0 0.0
    %525 = vmatpush1.msra.mxu0 0.0
    %526 = vmatprep.mubr.f32.mxu0 0.0
    %527 = vmatmul.mubr.f32.gmra.mrb[0].mxu0 %v383
    %v528 = vpop.f32.mrb[0].mxu0
    %v529 = vadd.f32 %v461, %v528
    %v530 = vpop.f32.mrb[0].mxu0
    %531 = vdwg.mxu0
    %v532 = vld [vmem:[#allocation7] sm:$0xff]
    %v533 = vld [vmem:[#allocation7 + $0x8] sm:$0xff]
    %v534 = vld [vmem:[#allocation7 + $0x10] sm:$0xff]
    %v535 = vld [vmem:[#allocation7 + $0x18] sm:$0xff]
    %v536 = vld [vmem:[#allocation7 + $0x20] sm:$0x1]
    %v537 = vlaneseq
    %v538 = vshrl.u32 %v537, 7
    %v539 = vsub.s32 0, %v538
    %v540 = vrot.slane %v536, %v539
    %vm541 = vcmask 261120
    %v543 = vsel %vm541, %v52, 0
    %545 = vmatprep.subr.mxu0 0.0
    %546 = vmatpush1.msra.mxu0 %v532
    %547 = vmatprep.subr.mxu0 0.0
    %548 = vmatpush1.msra.mxu0 %v533
    %549 = vmatprep.subr.mxu0 0.0
    %550 = vmatpush1.msra.mxu0 %v534
    %551 = vmatprep.subr.mxu0 0.0
    %552 = vmatpush1.msra.mxu0 %v535
    %553 = vmatprep.subr.mxu0 0.0
    %554 = vmatpush1.msra.mxu0 0.0
    %555 = vmatprep.subr.mxu0 0.0
    %556 = vmatpush1.msra.mxu0 0.0
    %557 = vmatprep.subr.mxu0 0.0
    %558 = vmatpush1.msra.mxu0 0.0
    %559 = vmatprep.subr.mxu0 0.0
    %560 = vmatpush1.msra.mxu0 0.0
    %561 = vmatprep.subr.mxu0 0.0
    %562 = vmatpush1.msra.mxu0 0.0
    %563 = vmatprep.subr.mxu0 0.0
    %564 = vmatpush1.msra.mxu0 0.0
    %565 = vmatprep.subr.mxu0 0.0
    %566 = vmatpush1.msra.mxu0 0.0
    %567 = vmatprep.subr.mxu0 0.0
    %568 = vmatpush1.msra.mxu0 0.0
    %569 = vmatprep.subr.mxu0 0.0
    %570 = vmatpush1.msra.mxu0 0.0
    %571 = vmatprep.subr.mxu0 0.0
    %572 = vmatpush1.msra.mxu0 0.0
    %573 = vmatprep.subr.mxu0 0.0
    %574 = vmatpush1.msra.mxu0 0.0
    %575 = vmatprep.subr.mxu0 0.0
    %576 = vmatpush1.msra.mxu0 0.0
    %577 = vmatprep.subr.mxu0 0.0
    %578 = vmatpush1.msra.mxu0 0.0
    %579 = vmatprep.subr.mxu0 0.0
    %580 = vmatpush1.msra.mxu0 0.0
    %581 = vmatprep.subr.mxu0 0.0
    %582 = vmatpush1.msra.mxu0 0.0
    %583 = vmatprep.subr.mxu0 0.0
    %584 = vmatpush1.msra.mxu0 0.0
    %585 = vmatprep.subr.mxu0 0.0
    %586 = vmatpush1.msra.mxu0 0.0
    %587 = vmatprep.subr.mxu0 0.0
    %588 = vmatpush1.msra.mxu0 0.0
    %589 = vmatprep.subr.mxu0 0.0
    %590 = vmatpush1.msra.mxu0 0.0
    %591 = vmatprep.subr.mxu0 0.0
    %592 = vmatpush1.msra.mxu0 0.0
    %593 = vmatprep.subr.mxu0 0.0
    %594 = vmatpush1.msra.mxu0 0.0
    %595 = vmatprep.subr.mxu0 0.0
    %596 = vmatpush1.msra.mxu0 0.0
    %597 = vmatprep.subr.mxu0 0.0
    %598 = vmatpush1.msra.mxu0 0.0
    %599 = vmatprep.subr.mxu0 0.0
    %600 = vmatpush1.msra.mxu0 0.0
    %601 = vmatprep.subr.mxu0 0.0
    %602 = vmatpush1.msra.mxu0 0.0
    %603 = vmatprep.subr.mxu0 0.0
    %604 = vmatpush1.msra.mxu0 0.0
    %605 = vmatprep.subr.mxu0 0.0
    %606 = vmatpush1.msra.mxu0 0.0
    %607 = vmatprep.subr.mxu0 0.0
    %608 = vmatpush1.msra.mxu0 0.0
    %609 = vmatprep.mubr.f32.mxu0 0.0
    %610 = vmatmul.mubr.f32.gmra.mrb[0].mxu0 %v543
    %v611 = vpop.f32.mrb[0].mxu0
    %v612 = vadd.f32 %v540, %v611
    %v613 = vpop.f32.mrb[0].mxu0
    %614 = vdwg.mxu0
    %v615 = vsel %vm541, %v612, 0.0
    %616 = vadd.xlane.f32.xlu0 %v615
    %v617 = vpop.xlane.xlu0 %616
    %v618 = vrcp.pop 32.0
    %v619 = vmul.f32 %v617, %v618
    %v620 = vsub.f32 %v612, %v619
    %v621 = vmul.f32 %v620, %v620
    %v622 = vsel %vm541, %v621, 0.0
    %623 = vadd.xlane.f32.xlu0 %v622
    %v624 = vpop.xlane.xlu0 %623
    %v625 = vmul.f32 %v624, %v618
    %v626 = vadd.f32 %v625, 1e-05
    %v627 = vrsqrt.pop %v626
    %v628 = vmul.f32 %v620, %v627
    %v629 = vadd.f32 %v215, 1.0
    %v630 = vmul.f32 %v628, %v629
    %v631 = vadd.f32 %v630, %v292
    %vm632 = vcmp.ge.f32.partialorder %v631, 0.0
    %v633 = vmul.f32 %v631, 0.2
    %v634 = vsel %vm632, %v631, %v633
    %v635 = vld [vmem:[#allocation7 + $0x28] sm:$0xff]
    %v636 = vld [vmem:[#allocation7 + $0x30] sm:$0xff]
    %v637 = vld [vmem:[#allocation7 + $0x38] sm:$0xff]
    %v638 = vld [vmem:[#allocation7 + $0x40] sm:$0xff]
    %v639 = vld [vmem:[#allocation7 + $0x48] sm:$0x1]
    %v640 = vlaneseq
    %v641 = vshrl.u32 %v640, 7
    %v642 = vsub.s32 0, %v641
    %v643 = vrot.slane %v639, %v642
    %v645 = vsel %vm541, %v634, 0
    %647 = vmatprep.subr.mxu0 0.0
    %648 = vmatpush1.msra.mxu0 %v635
    %649 = vmatprep.subr.mxu0 0.0
    %650 = vmatpush1.msra.mxu0 %v636
    %651 = vmatprep.subr.mxu0 0.0
    %652 = vmatpush1.msra.mxu0 %v637
    %653 = vmatprep.subr.mxu0 0.0
    %654 = vmatpush1.msra.mxu0 %v638
    %655 = vmatprep.subr.mxu0 0.0
    %656 = vmatpush1.msra.mxu0 0.0
    %657 = vmatprep.subr.mxu0 0.0
    %658 = vmatpush1.msra.mxu0 0.0
    %659 = vmatprep.subr.mxu0 0.0
    %660 = vmatpush1.msra.mxu0 0.0
    %661 = vmatprep.subr.mxu0 0.0
    %662 = vmatpush1.msra.mxu0 0.0
    %663 = vmatprep.subr.mxu0 0.0
    %664 = vmatpush1.msra.mxu0 0.0
    %665 = vmatprep.subr.mxu0 0.0
    %666 = vmatpush1.msra.mxu0 0.0
    %667 = vmatprep.subr.mxu0 0.0
    %668 = vmatpush1.msra.mxu0 0.0
    %669 = vmatprep.subr.mxu0 0.0
    %670 = vmatpush1.msra.mxu0 0.0
    %671 = vmatprep.subr.mxu0 0.0
    %672 = vmatpush1.msra.mxu0 0.0
    %673 = vmatprep.subr.mxu0 0.0
    %674 = vmatpush1.msra.mxu0 0.0
    %675 = vmatprep.subr.mxu0 0.0
    %676 = vmatpush1.msra.mxu0 0.0
    %677 = vmatprep.subr.mxu0 0.0
    %678 = vmatpush1.msra.mxu0 0.0
    %679 = vmatprep.subr.mxu0 0.0
    %680 = vmatpush1.msra.mxu0 0.0
    %681 = vmatprep.subr.mxu0 0.0
    %682 = vmatpush1.msra.mxu0 0.0
    %683 = vmatprep.subr.mxu0 0.0
    %684 = vmatpush1.msra.mxu0 0.0
    %685 = vmatprep.subr.mxu0 0.0
    %686 = vmatpush1.msra.mxu0 0.0
    %687 = vmatprep.subr.mxu0 0.0
    %688 = vmatpush1.msra.mxu0 0.0
    %689 = vmatprep.subr.mxu0 0.0
    %690 = vmatpush1.msra.mxu0 0.0
    %691 = vmatprep.subr.mxu0 0.0
    %692 = vmatpush1.msra.mxu0 0.0
    %693 = vmatprep.subr.mxu0 0.0
    %694 = vmatpush1.msra.mxu0 0.0
    %695 = vmatprep.subr.mxu0 0.0
    %696 = vmatpush1.msra.mxu0 0.0
    %697 = vmatprep.subr.mxu0 0.0
    %698 = vmatpush1.msra.mxu0 0.0
    %699 = vmatprep.subr.mxu0 0.0
    %700 = vmatpush1.msra.mxu0 0.0
    %701 = vmatprep.subr.mxu0 0.0
    %702 = vmatpush1.msra.mxu0 0.0
    %703 = vmatprep.subr.mxu0 0.0
    %704 = vmatpush1.msra.mxu0 0.0
    %705 = vmatprep.subr.mxu0 0.0
    %706 = vmatpush1.msra.mxu0 0.0
    %707 = vmatprep.subr.mxu0 0.0
    %708 = vmatpush1.msra.mxu0 0.0
    %709 = vmatprep.subr.mxu0 0.0
    %710 = vmatpush1.msra.mxu0 0.0
    %711 = vmatprep.mubr.f32.mxu0 0.0
    %712 = vmatmul.mubr.f32.gmra.mrb[0].mxu0 %v645
    %v713 = vpop.f32.mrb[0].mxu0
    %v714 = vadd.f32 %v643, %v713
    %v715 = vpop.f32.mrb[0].mxu0
    %716 = vdwg.mxu0
    %vm717 = vcmp.ge.f32.partialorder %v714, 0.0
    %v718 = vmul.f32 %v714, 0.2
    %v719 = vsel %vm717, %v714, %v718
    %v720 = vld [vmem:[#allocation7 + $0x50] sm:$0xff]
    %v721 = vld [vmem:[#allocation7 + $0x58] sm:$0xff]
    %v722 = vld [vmem:[#allocation7 + $0x60] sm:$0xff]
    %v723 = vld [vmem:[#allocation7 + $0x68] sm:$0xff]
    %v724 = vld [vmem:[#allocation7 + $0x70] sm:$0x1]
    %v725 = vlaneseq
    %v726 = vshrl.u32 %v725, 7
    %v727 = vsub.s32 0, %v726
    %v728 = vrot.slane %v724, %v727
    %v730 = vsel %vm541, %v719, 0
    %732 = vmatprep.subr.mxu0 0.0
    %733 = vmatpush1.msra.mxu0 %v720
    %734 = vmatprep.subr.mxu0 0.0
    %735 = vmatpush1.msra.mxu0 %v721
    %736 = vmatprep.subr.mxu0 0.0
    %737 = vmatpush1.msra.mxu0 %v722
    %738 = vmatprep.subr.mxu0 0.0
    %739 = vmatpush1.msra.mxu0 %v723
    %740 = vmatprep.subr.mxu0 0.0
    %741 = vmatpush1.msra.mxu0 0.0
    %742 = vmatprep.subr.mxu0 0.0
    %743 = vmatpush1.msra.mxu0 0.0
    %744 = vmatprep.subr.mxu0 0.0
    %745 = vmatpush1.msra.mxu0 0.0
    %746 = vmatprep.subr.mxu0 0.0
    %747 = vmatpush1.msra.mxu0 0.0
    %748 = vmatprep.subr.mxu0 0.0
    %749 = vmatpush1.msra.mxu0 0.0
    %750 = vmatprep.subr.mxu0 0.0
    %751 = vmatpush1.msra.mxu0 0.0
    %752 = vmatprep.subr.mxu0 0.0
    %753 = vmatpush1.msra.mxu0 0.0
    %754 = vmatprep.subr.mxu0 0.0
    %755 = vmatpush1.msra.mxu0 0.0
    %756 = vmatprep.subr.mxu0 0.0
    %757 = vmatpush1.msra.mxu0 0.0
    %758 = vmatprep.subr.mxu0 0.0
    %759 = vmatpush1.msra.mxu0 0.0
    %760 = vmatprep.subr.mxu0 0.0
    %761 = vmatpush1.msra.mxu0 0.0
    %762 = vmatprep.subr.mxu0 0.0
    %763 = vmatpush1.msra.mxu0 0.0
    %764 = vmatprep.subr.mxu0 0.0
    %765 = vmatpush1.msra.mxu0 0.0
    %766 = vmatprep.subr.mxu0 0.0
    %767 = vmatpush1.msra.mxu0 0.0
    %768 = vmatprep.subr.mxu0 0.0
    %769 = vmatpush1.msra.mxu0 0.0
    %770 = vmatprep.subr.mxu0 0.0
    %771 = vmatpush1.msra.mxu0 0.0
    %772 = vmatprep.subr.mxu0 0.0
    %773 = vmatpush1.msra.mxu0 0.0
    %774 = vmatprep.subr.mxu0 0.0
    %775 = vmatpush1.msra.mxu0 0.0
    %776 = vmatprep.subr.mxu0 0.0
    %777 = vmatpush1.msra.mxu0 0.0
    %778 = vmatprep.subr.mxu0 0.0
    %779 = vmatpush1.msra.mxu0 0.0
    %780 = vmatprep.subr.mxu0 0.0
    %781 = vmatpush1.msra.mxu0 0.0
    %782 = vmatprep.subr.mxu0 0.0
    %783 = vmatpush1.msra.mxu0 0.0
    %784 = vmatprep.subr.mxu0 0.0
    %785 = vmatpush1.msra.mxu0 0.0
    %786 = vmatprep.subr.mxu0 0.0
    %787 = vmatpush1.msra.mxu0 0.0
    %788 = vmatprep.subr.mxu0 0.0
    %789 = vmatpush1.msra.mxu0 0.0
    %790 = vmatprep.subr.mxu0 0.0
    %791 = vmatpush1.msra.mxu0 0.0
    %792 = vmatprep.subr.mxu0 0.0
    %793 = vmatpush1.msra.mxu0 0.0
    %794 = vmatprep.subr.mxu0 0.0
    %795 = vmatpush1.msra.mxu0 0.0
    %796 = vmatprep.mubr.f32.mxu0 0.0
    %797 = vmatmul.mubr.f32.gmra.mrb[0].mxu0 %v730
    %v798 = vpop.f32.mrb[0].mxu0
    %v799 = vadd.f32 %v728, %v798
    %v800 = vpop.f32.mrb[0].mxu0
    %801 = vdwg.mxu0
    %v802 = vsel %vm541, %v799, 0.0
    %803 = vadd.xlane.f32.xlu0 %v802
    %v804 = vpop.xlane.xlu0 %803
    %v805 = vmul.f32 %v804, %v618
    %v806 = vsub.f32 %v799, %v805
    %v807 = vmul.f32 %v806, %v806
    %v808 = vsel %vm541, %v807, 0.0
    %809 = vadd.xlane.f32.xlu0 %v808
    %v810 = vpop.xlane.xlu0 %809
    %v811 = vmul.f32 %v810, %v618
    %v812 = vadd.f32 %v811, 1e-05
    %v813 = vrsqrt.pop %v812
    %v814 = vmul.f32 %v806, %v813
    %v815 = vadd.f32 %v452, 1.0
    %v816 = vmul.f32 %v814, %v815
    %v817 = vadd.f32 %v816, %v529
    %vm818 = vcmp.ge.f32.partialorder %v817, 0.0
    %v819 = vmul.f32 %v817, 0.2
    %v820 = vsel %vm818, %v817, %v819
    %v821 = vld [vmem:[#allocation7 + $0x78] sm:$0xff]
    %v822 = vld [vmem:[#allocation7 + $0x80] sm:$0xff]
    %v823 = vld [vmem:[#allocation7 + $0x88] sm:$0xff]
    %v824 = vld [vmem:[#allocation7 + $0x90] sm:$0xff]
    %v825 = vld [vmem:[#allocation7 + $0x98] sm:$0x1]
    %v826 = vlaneseq
    %v827 = vshrl.u32 %v826, 7
    %v828 = vsub.s32 0, %v827
    %v829 = vrot.slane %v825, %v828
    %v831 = vsel %vm541, %v820, 0
    %833 = vmatprep.subr.mxu0 0.0
    %834 = vmatpush1.msra.mxu0 %v821
    %835 = vmatprep.subr.mxu0 0.0
    %836 = vmatpush1.msra.mxu0 %v822
    %837 = vmatprep.subr.mxu0 0.0
    %838 = vmatpush1.msra.mxu0 %v823
    %839 = vmatprep.subr.mxu0 0.0
    %840 = vmatpush1.msra.mxu0 %v824
    %841 = vmatprep.subr.mxu0 0.0
    %842 = vmatpush1.msra.mxu0 0.0
    %843 = vmatprep.subr.mxu0 0.0
    %844 = vmatpush1.msra.mxu0 0.0
    %845 = vmatprep.subr.mxu0 0.0
    %846 = vmatpush1.msra.mxu0 0.0
    %847 = vmatprep.subr.mxu0 0.0
    %848 = vmatpush1.msra.mxu0 0.0
    %849 = vmatprep.subr.mxu0 0.0
    %850 = vmatpush1.msra.mxu0 0.0
    %851 = vmatprep.subr.mxu0 0.0
    %852 = vmatpush1.msra.mxu0 0.0
    %853 = vmatprep.subr.mxu0 0.0
    %854 = vmatpush1.msra.mxu0 0.0
    %855 = vmatprep.subr.mxu0 0.0
    %856 = vmatpush1.msra.mxu0 0.0
    %857 = vmatprep.subr.mxu0 0.0
    %858 = vmatpush1.msra.mxu0 0.0
    %859 = vmatprep.subr.mxu0 0.0
    %860 = vmatpush1.msra.mxu0 0.0
    %861 = vmatprep.subr.mxu0 0.0
    %862 = vmatpush1.msra.mxu0 0.0
    %863 = vmatprep.subr.mxu0 0.0
    %864 = vmatpush1.msra.mxu0 0.0
    %865 = vmatprep.subr.mxu0 0.0
    %866 = vmatpush1.msra.mxu0 0.0
    %867 = vmatprep.subr.mxu0 0.0
    %868 = vmatpush1.msra.mxu0 0.0
    %869 = vmatprep.subr.mxu0 0.0
    %870 = vmatpush1.msra.mxu0 0.0
    %871 = vmatprep.subr.mxu0 0.0
    %872 = vmatpush1.msra.mxu0 0.0
    %873 = vmatprep.subr.mxu0 0.0
    %874 = vmatpush1.msra.mxu0 0.0
    %875 = vmatprep.subr.mxu0 0.0
    %876 = vmatpush1.msra.mxu0 0.0
    %877 = vmatprep.subr.mxu0 0.0
    %878 = vmatpush1.msra.mxu0 0.0
    %879 = vmatprep.subr.mxu0 0.0
    %880 = vmatpush1.msra.mxu0 0.0
    %881 = vmatprep.subr.mxu0 0.0
    %882 = vmatpush1.msra.mxu0 0.0
    %883 = vmatprep.subr.mxu0 0.0
    %884 = vmatpush1.msra.mxu0 0.0
    %885 = vmatprep.subr.mxu0 0.0
    %886 = vmatpush1.msra.mxu0 0.0
    %887 = vmatprep.subr.mxu0 0.0
    %888 = vmatpush1.msra.mxu0 0.0
    %889 = vmatprep.subr.mxu0 0.0
    %890 = vmatpush1.msra.mxu0 0.0
    %891 = vmatprep.subr.mxu0 0.0
    %892 = vmatpush1.msra.mxu0 0.0
    %893 = vmatprep.subr.mxu0 0.0
    %894 = vmatpush1.msra.mxu0 0.0
    %895 = vmatprep.subr.mxu0 0.0
    %896 = vmatpush1.msra.mxu0 0.0
    %897 = vmatprep.mubr.f32.mxu0 0.0
    %898 = vmatmul.mubr.f32.gmra.mrb[0].mxu0 %v831
    %v899 = vpop.f32.mrb[0].mxu0
    %v900 = vadd.f32 %v829, %v899
    %v901 = vpop.f32.mrb[0].mxu0
    %902 = vdwg.mxu0
    %vm903 = vcmp.ge.f32.partialorder %v900, 0.0
    %v904 = vmul.f32 %v900, 0.2
    %v905 = vsel %vm903, %v900, %v904
    %v906 = vld [vmem:[#allocation7 + $0xa0] sm:$0xff]
    %v907 = vld [vmem:[#allocation7 + $0xa8] sm:$0xff]
    %v908 = vld [vmem:[#allocation7 + $0xb0] sm:$0xff]
    %v909 = vld [vmem:[#allocation7 + $0xb8] sm:$0xff]
    %v910 = vld [vmem:[#allocation7 + $0xc0] sm:$0xff]
    %v911 = vld [vmem:[#allocation7 + $0xc8] sm:$0xff]
    %v912 = vld [vmem:[#allocation7 + $0xd0] sm:$0xff]
    %v913 = vld [vmem:[#allocation7 + $0xd8] sm:$0xff]
    %v914 = vld [vmem:[#allocation7 + $0xe0] sm:$0x1]
    %v915 = vlaneseq
    %v916 = vshrl.u32 %v915, 7
    %v917 = vsub.s32 0, %v916
    %v918 = vrot.slane %v914, %v917
    %vm919 = vcmask 523264
    %v921 = vsel %vm919, %v905, 0
    %923 = vmatprep.subr.mxu0 0.0
    %924 = vmatpush1.msra.mxu0 %v906
    %925 = vmatprep.subr.mxu0 0.0
    %926 = vmatpush1.msra.mxu0 %v907
    %927 = vmatprep.subr.mxu0 0.0
    %928 = vmatpush1.msra.mxu0 %v908
    %929 = vmatprep.subr.mxu0 0.0
    %930 = vmatpush1.msra.mxu0 %v909
    %931 = vmatprep.subr.mxu0 0.0
    %932 = vmatpush1.msra.mxu0 %v910
    %933 = vmatprep.subr.mxu0 0.0
    %934 = vmatpush1.msra.mxu0 %v911
    %935 = vmatprep.subr.mxu0 0.0
    %936 = vmatpush1.msra.mxu0 %v912
    %937 = vmatprep.subr.mxu0 0.0
    %938 = vmatpush1.msra.mxu0 %v913
    %939 = vmatprep.subr.mxu0 0.0
    %940 = vmatpush1.msra.mxu0 0.0
    %941 = vmatprep.subr.mxu0 0.0
    %942 = vmatpush1.msra.mxu0 0.0
    %943 = vmatprep.subr.mxu0 0.0
    %944 = vmatpush1.msra.mxu0 0.0
    %945 = vmatprep.subr.mxu0 0.0
    %946 = vmatpush1.msra.mxu0 0.0
    %947 = vmatprep.subr.mxu0 0.0
    %948 = vmatpush1.msra.mxu0 0.0
    %949 = vmatprep.subr.mxu0 0.0
    %950 = vmatpush1.msra.mxu0 0.0
    %951 = vmatprep.subr.mxu0 0.0
    %952 = vmatpush1.msra.mxu0 0.0
    %953 = vmatprep.subr.mxu0 0.0
    %954 = vmatpush1.msra.mxu0 0.0
    %955 = vmatprep.subr.mxu0 0.0
    %956 = vmatpush1.msra.mxu0 0.0
    %957 = vmatprep.subr.mxu0 0.0
    %958 = vmatpush1.msra.mxu0 0.0
    %959 = vmatprep.subr.mxu0 0.0
    %960 = vmatpush1.msra.mxu0 0.0
    %961 = vmatprep.subr.mxu0 0.0
    %962 = vmatpush1.msra.mxu0 0.0
    %963 = vmatprep.subr.mxu0 0.0
    %964 = vmatpush1.msra.mxu0 0.0
    %965 = vmatprep.subr.mxu0 0.0
    %966 = vmatpush1.msra.mxu0 0.0
    %967 = vmatprep.subr.mxu0 0.0
    %968 = vmatpush1.msra.mxu0 0.0
    %969 = vmatprep.subr.mxu0 0.0
    %970 = vmatpush1.msra.mxu0 0.0
    %971 = vmatprep.subr.mxu0 0.0
    %972 = vmatpush1.msra.mxu0 0.0
    %973 = vmatprep.subr.mxu0 0.0
    %974 = vmatpush1.msra.mxu0 0.0
    %975 = vmatprep.subr.mxu0 0.0
    %976 = vmatpush1.msra.mxu0 0.0
    %977 = vmatprep.subr.mxu0 0.0
    %978 = vmatpush1.msra.mxu0 0.0
    %979 = vmatprep.subr.mxu0 0.0
    %980 = vmatpush1.msra.mxu0 0.0
    %981 = vmatprep.subr.mxu0 0.0
    %982 = vmatpush1.msra.mxu0 0.0
    %983 = vmatprep.subr.mxu0 0.0
    %984 = vmatpush1.msra.mxu0 0.0
    %985 = vmatprep.subr.mxu0 0.0
    %986 = vmatpush1.msra.mxu0 0.0
    %987 = vmatprep.mubr.f32.mxu0 0.0
    %988 = vmatmul.mubr.f32.gmra.mrb[0].mxu0 %v921
    %v989 = vpop.f32.mrb[0].mxu0
    %v990 = vadd.f32 %v918, %v989
    %v991 = vpop.f32.mrb[0].mxu0
    %992 = vdwg.mxu0
    %vm993 = vcmp.ge.f32.partialorder %v990, 0.0
    %v994 = vmul.f32 %v990, 0.2
    %v995 = vsel %vm993, %v990, %v994
    %v996 = vld [vmem:[#allocation7 + $0xe8] sm:$0xff]
    %v997 = vld [vmem:[#allocation7 + $0xf0] sm:$0xff]
    %v998 = vld [vmem:[#allocation7 + $0xf8] sm:$0xff]
    %v999 = vld [vmem:[#allocation7 + $0x100] sm:$0xff]
    %v1000 = vld [vmem:[#allocation7 + $0x108] sm:$0x1]
    %v1001 = vlaneseq
    %v1002 = vshrl.u32 %v1001, 7
    %v1003 = vsub.s32 0, %v1002
    %v1004 = vrot.slane %v1000, %v1003
    %v1006 = vsel %vm541, %v995, 0
    %1008 = vmatprep.subr.mxu0 0.0
    %1009 = vmatpush1.msra.mxu0 %v996
    %1010 = vmatprep.subr.mxu0 0.0
    %1011 = vmatpush1.msra.mxu0 %v997
    %1012 = vmatprep.subr.mxu0 0.0
    %1013 = vmatpush1.msra.mxu0 %v998
    %1014 = vmatprep.subr.mxu0 0.0
    %1015 = vmatpush1.msra.mxu0 %v999
    %1016 = vmatprep.subr.mxu0 0.0
    %1017 = vmatpush1.msra.mxu0 0.0
    %1018 = vmatprep.subr.mxu0 0.0
    %1019 = vmatpush1.msra.mxu0 0.0
    %1020 = vmatprep.subr.mxu0 0.0
    %1021 = vmatpush1.msra.mxu0 0.0
    %1022 = vmatprep.subr.mxu0 0.0
    %1023 = vmatpush1.msra.mxu0 0.0
    %1024 = vmatprep.subr.mxu0 0.0
    %1025 = vmatpush1.msra.mxu0 0.0
    %1026 = vmatprep.subr.mxu0 0.0
    %1027 = vmatpush1.msra.mxu0 0.0
    %1028 = vmatprep.subr.mxu0 0.0
    %1029 = vmatpush1.msra.mxu0 0.0
    %1030 = vmatprep.subr.mxu0 0.0
    %1031 = vmatpush1.msra.mxu0 0.0
    %1032 = vmatprep.subr.mxu0 0.0
    %1033 = vmatpush1.msra.mxu0 0.0
    %1034 = vmatprep.subr.mxu0 0.0
    %1035 = vmatpush1.msra.mxu0 0.0
    %1036 = vmatprep.subr.mxu0 0.0
    %1037 = vmatpush1.msra.mxu0 0.0
    %1038 = vmatprep.subr.mxu0 0.0
    %1039 = vmatpush1.msra.mxu0 0.0
    %1040 = vmatprep.subr.mxu0 0.0
    %1041 = vmatpush1.msra.mxu0 0.0
    %1042 = vmatprep.subr.mxu0 0.0
    %1043 = vmatpush1.msra.mxu0 0.0
    %1044 = vmatprep.subr.mxu0 0.0
    %1045 = vmatpush1.msra.mxu0 0.0
    %1046 = vmatprep.subr.mxu0 0.0
    %1047 = vmatpush1.msra.mxu0 0.0
    %1048 = vmatprep.subr.mxu0 0.0
    %1049 = vmatpush1.msra.mxu0 0.0
    %1050 = vmatprep.subr.mxu0 0.0
    %1051 = vmatpush1.msra.mxu0 0.0
    %1052 = vmatprep.subr.mxu0 0.0
    %1053 = vmatpush1.msra.mxu0 0.0
    %1054 = vmatprep.subr.mxu0 0.0
    %1055 = vmatpush1.msra.mxu0 0.0
    %1056 = vmatprep.subr.mxu0 0.0
    %1057 = vmatpush1.msra.mxu0 0.0
    %1058 = vmatprep.subr.mxu0 0.0
    %1059 = vmatpush1.msra.mxu0 0.0
    %1060 = vmatprep.subr.mxu0 0.0
    %1061 = vmatpush1.msra.mxu0 0.0
    %1062 = vmatprep.subr.mxu0 0.0
    %1063 = vmatpush1.msra.mxu0 0.0
    %1064 = vmatprep.subr.mxu0 0.0
    %1065 = vmatpush1.msra.mxu0 0.0
    %1066 = vmatprep.subr.mxu0 0.0
    %1067 = vmatpush1.msra.mxu0 0.0
    %1068 = vmatprep.subr.mxu0 0.0
    %1069 = vmatpush1.msra.mxu0 0.0
    %1070 = vmatprep.subr.mxu0 0.0
    %1071 = vmatpush1.msra.mxu0 0.0
    %1072 = vmatprep.mubr.f32.mxu0 0.0
    %1073 = vmatmul.mubr.f32.gmra.mrb[0].mxu0 %v1006
    %v1074 = vpop.f32.mrb[0].mxu0
    %v1075 = vadd.f32 %v1004, %v1074
    %v1076 = vpop.f32.mrb[0].mxu0
    %1077 = vdwg.mxu0
    %v1078 = vxor.u32 %v1075, 2147483648
    %v1079 = vmul.f32 %v1078, 1.442695
    %v1080 = vpow.pop %v1079
    %v1081 = vadd.f32 %v1080, 1.0
    %v1082 = vrcp.pop %v1081
    %v1083 = vmul.f32 1.0, %v1082
    %1084 = vst.msk [vmem:[#allocation8] sm:$0xff] %vm541, %v1083
    // Predicated region
    $region26: #{tpu_custom_call.1} parent=1 // pred_check
      _
    $region27: #{tpu_custom_call.1} parent=1 // pred_check_branch
      %1086 = sbr.rel (0) target = $region29
    $region28: #{tpu_custom_call.1} parent=1 // pred_region
      %s1088 = ssub.s32 128, 128
      %1089 = vsyncadd [#allocation4], %s1088
      %s1091 = sshll.u32 [#allocation8], 4
      %s1092 = int_to_ptr.vmem [resolvable:$true] %s1091
      %1094 = dma.vmem_to_hbm [thread:$0]  %s1092, 128, %s3, [#allocation4]
    $region29: #{tpu_custom_call.1} parent=1 // pred_fallthru
      _
    // Predicated region
    $region30: #{tpu_custom_call.1} parent=1 // pred_check
      _
    $region31: #{tpu_custom_call.1} parent=1 // pred_check_branch
      %1096 = sbr.rel (0) target = $region33
    $region32: #{tpu_custom_call.1} parent=1 // pred_region
      %1097 = dma.done [#allocation4], 128
    $region33: #{tpu_custom_call.1} parent=1 // pred_fallthru
      _
    %1098 = vsyncpa [#allocation3], 1
    %1099 = vsyncpa [#allocation6], 1
    %1100 = vsyncpa [#allocation4], 1

</llo_original>
